<compile_context>
chip_gen: v5e
topology: v5e:2x2
jax: 0.10.0
libtpu: 0.0.40
codegen_flags: <defaults>
</compile_context>

<pallas_src>
import jax
import jax.numpy as jnp
import numpy as np
from jax.experimental import pallas as pl
from jax.experimental.pallas import tpu as pltpu


def _round_up(x: int, m: int) -> int:
    return ((x + m - 1) // m) * m


def _cdiv(a: int, b: int) -> int:
    return -(-a // b)


def _feature_residual_kernel(pk_ref, keys_ref, knorm_ref, feat_ref, x_ref, o_ref):
    # pk_ref:    (TB, K)  predicted-key batch block (streamed, double-buffered)
    # keys_ref:  (K,  N)  -2 * key^T, f32, resident (single-buffered)
    # knorm_ref: (1,  N)  ||k||^2 per lookup row, f32, resident
    # feat_ref:  (N,  F)  lookup features, native dtype, resident
    # x_ref:     (TB, F)  features batch block (streamed)
    # o_ref:     (TB, F)  output batch block
    q = pk_ref[...].astype(jnp.float32)                                     # (TB, K), K tiny

    # Squared euclidean distance up to the per-row constant ||q||^2 (argmin-
    # equivalent): d2 = ||k||^2 - 2 q.k. The -2 scale is pre-folded into keys_ref,
    # so only one f32 broadcast add remains on the (TB, N) tile.
    cross = jnp.dot(q, keys_ref[...], preferred_element_type=jnp.float32)   # (TB, N)
    d2 = cross + knorm_ref[...]                                             # (TB, N)

    n = d2.shape[-1]
    lane_iota = jax.lax.broadcasted_iota(jnp.int32, d2.shape, dimension=1)  # (TB, N)
    d_min = jnp.min(d2, axis=-1, keepdims=True)                             # (TB, 1)
    # First index attaining the minimum (torch.argmin tie behaviour).
    idx = jnp.min(jnp.where(d2 == d_min, lane_iota, n),
                  axis=-1, keepdims=True)                                   # (TB, 1)

    # Row gather as a one-hot matmul on the MXU, in the feature table's native
    # dtype (one-hot selection is exact in bf16 too); f32 accumulation.
    onehot = (lane_iota == idx).astype(feat_ref.dtype)                      # (TB, N)
    closest = jnp.dot(onehot, feat_ref[...],
                      preferred_element_type=jnp.float32)                   # (TB, F)

    o_ref[...] = (x_ref[...].astype(jnp.float32) - closest).astype(o_ref.dtype)


def make_feature_residual(lookup_table, lookup_key_indices, feature_indices):
    """One-time table preprocessing; returns apply(predicted_key, features)."""
    keys = lookup_table[:, lookup_key_indices].astype(jnp.float32)          # (N, K)
    keys_scaled = (-2.0 * keys).T                                           # (K, N) f32
    knorm = jnp.sum(keys * keys, axis=1, keepdims=True).T                   # (1, N) f32
    feat_table = lookup_table[:, feature_indices]                           # (N, F) native

    N, K = keys.shape
    F = feat_table.shape[1]
    elt = jnp.dtype(lookup_table.dtype).itemsize

    try:
        phys_vmem = pltpu.get_tpu_info().vmem_capacity_bytes
    except Exception:
        phys_vmem = 64 << 20                    # conservative: v7x per-TC VMEM
    vmem_cap = (phys_vmem * 10) // 16           # ~40 MiB on v7x, ~80 MiB on v5e/v6e

    def _pick_tb(B: int) -> int:
        # Largest batch tile whose resident tables + double-buffered streamed
        # blocks + live (tb, N) f32 intermediates fit the scoped VMEM budget.
        table_bytes = (K + 1) * N * 4 + N * F * elt
        headroom = 4 << 20                       # Mosaic internal scratch etc.
        tb = 8
        for cand in (1024, 512, 256, 128, 64, 32, 16, 8):
            stream = 2 * cand * (K * elt + 2 * F * elt)      # pk / x / out, double-buffered
            interm = 3 * cand * N * 4 + cand * F * 4         # d2 / onehot / misc f32 temps
            if table_bytes + stream + interm + headroom <= vmem_cap:
                tb = cand
                break
        if B <= 8:
            return B                             # single full-extent block (legal)
        # Keep >= 2 grid steps so both v7x TensorCores get work under
        # dimension_semantics=("parallel",); negligible cost on 1-TC chips.
        return min(tb, max(8, _round_up(_cdiv(B, 2), 8)))

    def apply(predicted_key, features):
        B = predicted_key.shape[0]
        assert predicted_key.shape[1] == K and features.shape[1] == F
        tb = _pick_tb(B)
        grid = (_cdiv(B, tb),)
        return pl.pallas_call(
            _feature_residual_kernel,
            out_shape=jax.ShapeDtypeStruct((B, F), features.dtype),
            grid_spec=pltpu.PrefetchScalarGridSpec(
                num_scalar_prefetch=0,
                grid=grid,
                in_specs=[
                    # batch-streamed inputs (double-buffered by default)
                    pl.BlockSpec((tb, K), lambda i: (i, 0)),
                    # resident tables: constant block index -> single buffer
                    pl.BlockSpec((K, N), lambda i: (0, 0),
                                 pipeline_mode=pl.Buffered(1)),
                    pl.BlockSpec((1, N), lambda i: (0, 0),
                                 pipeline_mode=pl.Buffered(1)),
                    pl.BlockSpec((N, F), lambda i: (0, 0),
                                 pipeline_mode=pl.Buffered(1)),
                    pl.BlockSpec((tb, F), lambda i: (i, 0)),
                ],
                out_specs=pl.BlockSpec((tb, F), lambda i: (i, 0)),
            ),
            compiler_params=pltpu.CompilerParams(
                dimension_semantics=("parallel",),
                vmem_limit_bytes=int(vmem_cap)),
        )(predicted_key, keys_scaled, knorm, feat_table, features)

    return apply


def feature_residual(predicted_key, features, lookup_table,
                     lookup_key_indices, feature_indices):
    """Convenience single-call wrapper (prefer the factory for repeated calls)."""
    return make_feature_residual(lookup_table, lookup_key_indices, feature_indices)(
        predicted_key, features)


def _reference(predicted_key, features, lookup_table, lookup_key_indices, feature_indices):
    keys = lookup_table[:, lookup_key_indices]                      # (N, K)
    diff = predicted_key[:, None, :] - keys[None, :, :]             # (B, N, K)
    dist = jnp.sqrt(jnp.sum(diff * diff, axis=-1))                  # (B, N)
    idx = jnp.argmin(dist, axis=1)                                  # (B,)
    closest = lookup_table[idx[:, None], feature_indices[None, :]]  # (B, F)
    return features - closest


if __name__ == "__main__":
    key = jax.random.PRNGKey(0)
    k1, k2, k3, k4, k5 = jax.random.split(key, 5)

    N = 128         # lookup table rows
    D = 12          # lookup table columns
    K = 4           # number of key columns
    F = 8           # number of feature columns

    lookup_table = jax.random.normal(k1, (N, D), dtype=jnp.float32)
    lookup_key_indices = jnp.arange(0, K, dtype=jnp.int32)      # columns 0..3 are keys
    feature_indices = jnp.arange(K, K + F, dtype=jnp.int32)     # columns 4..11 are features

    # Tables preprocessed once; reused across calls (hoisted glue).
    residual = make_feature_residual(lookup_table, lookup_key_indices, feature_indices)

    # Case 1: tile-aligned batch (multi-step parallel grid).
    B1 = 16
    pk1 = jax.random.normal(k2, (B1, K), dtype=jnp.float32)
    x1 = jax.random.normal(k3, (B1, F), dtype=jnp.float32)
    out1 = jax.block_until_ready(residual(pk1, x1))
    ref1 = _reference(pk1, x1, lookup_table, lookup_key_indices, feature_indices)
    assert out1.shape == (B1, F)
    assert np.allclose(np.asarray(out1), np.asarray(ref1), atol=1e-5), "mismatch (case 1)"

    # Case 2: ragged batch (exercises the masked partial trailing block).
    B2 = 13
    pk2 = jax.random.normal(k4, (B2, K), dtype=jnp.float32)
    x2 = jax.random.normal(k5, (B2, F), dtype=jnp.float32)
    out2 = jax.block_until_ready(residual(pk2, x2))
    ref2 = _reference(pk2, x2, lookup_table, lookup_key_indices, feature_indices)
    assert out2.shape == (B2, F)
    assert np.allclose(np.asarray(out2), np.asarray(ref2), atol=1e-5), "mismatch (case 2)"

    print("KERNEL_OK")
</pallas_src>

<mosaic_0001>
module attributes {stable_mosaic.version = 11 : i64} {
  func.func @_feature_residual_kernel(%arg0: i32, %arg1: memref<8x4xf32, #tpu.memory_space<vmem>>, %arg2: memref<4x128xf32, #tpu.memory_space<vmem>>, %arg3: memref<1x128xf32, #tpu.memory_space<vmem>>, %arg4: memref<128x8xf32, #tpu.memory_space<vmem>>, %arg5: memref<8x8xf32, #tpu.memory_space<vmem>>, %arg6: memref<8x8xf32, #tpu.memory_space<vmem>>) attributes {dimension_semantics = [#tpu.dimension_semantics<parallel>], iteration_bounds = array<i64: 2>, scalar_prefetch = 0 : i64, scratch_operands = 0 : i64, tpu.core_type = #tpu.core_type<tc>, window_params = [{transform_indices = @transform_0, window_bounds = array<i64: 8, 4>}, {pipeline_mode = #tpu.pipeline_mode<synchronous>, transform_indices = @transform_1, window_bounds = array<i64: 4, 128>}, {pipeline_mode = #tpu.pipeline_mode<synchronous>, transform_indices = @transform_2, window_bounds = array<i64: 1, 128>}, {pipeline_mode = #tpu.pipeline_mode<synchronous>, transform_indices = @transform_3, window_bounds = array<i64: 128, 8>}, {transform_indices = @transform_4, window_bounds = array<i64: 8, 8>}, {transform_indices = @transform_5, window_bounds = array<i64: 8, 8>}]} {
    %c0 = arith.constant 0 : index
    %c0_0 = arith.constant 0 : index
    %0 = vector.load %arg1[%c0, %c0_0] : memref<8x4xf32, #tpu.memory_space<vmem>>, vector<8x4xf32>
    %c0_1 = arith.constant 0 : index
    %c0_2 = arith.constant 0 : index
    %1 = vector.load %arg2[%c0_1, %c0_2] : memref<4x128xf32, #tpu.memory_space<vmem>>, vector<4x128xf32>
    %cst = arith.constant dense<0.000000e+00> : vector<8x128xf32>
    %2 = tpu.matmul %0, %1, %cst {dimension_numbers = #tpu.dot_dimension_numbers<[1], [0], [0], [1], [0, 0, 1, 1], [], []>} : vector<8x4xf32>, vector<4x128xf32>, vector<8x128xf32> -> vector<8x128xf32>
    %c0_3 = arith.constant 0 : index
    %c0_4 = arith.constant 0 : index
    %3 = vector.load %arg3[%c0_3, %c0_4] : memref<1x128xf32, #tpu.memory_space<vmem>>, vector<1x128xf32>
    %4 = vector.broadcast %3 : vector<1x128xf32> to vector<8x128xf32>
    %5 = arith.addf %2, %4 : vector<8x128xf32>
    %6 = tpu.iota {dimensions = array<i32: 1>} : vector<8x128xi32>
    %cst_5 = arith.constant dense<0x7F800000> : vector<8xf32>
    %7 = vector.multi_reduction <minimumf>, %5, %cst_5 [1] : vector<8x128xf32> to vector<8xf32>
    %8 = vector.shape_cast %7 : vector<8xf32> to vector<8x1xf32>
    %9 = vector.broadcast %8 : vector<8x1xf32> to vector<8x128xf32>
    %10 = arith.cmpf oeq, %5, %9 : vector<8x128xf32>
    %c128_i32 = arith.constant 128 : i32
    %11 = vector.broadcast %c128_i32 : i32 to vector<8x128xi32>
    %12 = arith.select %10, %6, %11 : vector<8x128xi1>, vector<8x128xi32>
    %cst_6 = arith.constant dense<2147483647> : vector<8xi32>
    %13 = vector.multi_reduction <minsi>, %12, %cst_6 [1] : vector<8x128xi32> to vector<8xi32>
    %14 = vector.shape_cast %13 : vector<8xi32> to vector<8x1xi32>
    %15 = vector.broadcast %14 : vector<8x1xi32> to vector<8x128xi32>
    %16 = arith.cmpi eq, %6, %15 : vector<8x128xi32>
    %17 = arith.extui %16 : vector<8x128xi1> to vector<8x128xi32>
    %18 = arith.sitofp %17 : vector<8x128xi32> to vector<8x128xf32>
    %c0_7 = arith.constant 0 : index
    %c0_8 = arith.constant 0 : index
    %19 = vector.load %arg4[%c0_7, %c0_8] : memref<128x8xf32, #tpu.memory_space<vmem>>, vector<128x8xf32>
    %cst_9 = arith.constant dense<0.000000e+00> : vector<8x8xf32>
    %20 = tpu.matmul %18, %19, %cst_9 {dimension_numbers = #tpu.dot_dimension_numbers<[1], [0], [0], [1], [0, 0, 1, 1], [], []>} : vector<8x128xf32>, vector<128x8xf32>, vector<8x8xf32> -> vector<8x8xf32>
    %c0_10 = arith.constant 0 : index
    %c0_11 = arith.constant 0 : index
    %21 = vector.load %arg5[%c0_10, %c0_11] : memref<8x8xf32, #tpu.memory_space<vmem>>, vector<8x8xf32>
    %22 = arith.subf %21, %20 : vector<8x8xf32>
    %c0_12 = arith.constant 0 : index
    %c0_13 = arith.constant 0 : index
    %23 = vector.load %arg6[%c0_12, %c0_13] : memref<8x8xf32, #tpu.memory_space<vmem>>, vector<8x8xf32>
    tpu.vector_store %arg6[%c0_12, %c0_13], %22 {strides = array<i32>} : memref<8x8xf32, #tpu.memory_space<vmem>>, vector<8x8xf32>,
    return
  }
  func.func @transform_0(%arg0: i32) -> (i32, i32) {
    %c0_i32 = arith.constant 0 : i32
    %c0_i32_0 = arith.constant 0 : i32
    return %arg0, %c0_i32 : i32, i32
  }
  func.func @transform_1(%arg0: i32) -> (i32, i32) {
    %c0_i32 = arith.constant 0 : i32
    %c0_i32_0 = arith.constant 0 : i32
    %c0_i32_1 = arith.constant 0 : i32
    return %c0_i32, %c0_i32_0 : i32, i32
  }
  func.func @transform_2(%arg0: i32) -> (i32, i32) {
    %c0_i32 = arith.constant 0 : i32
    %c0_i32_0 = arith.constant 0 : i32
    %c0_i32_1 = arith.constant 0 : i32
    return %c0_i32, %c0_i32_0 : i32, i32
  }
  func.func @transform_3(%arg0: i32) -> (i32, i32) {
    %c0_i32 = arith.constant 0 : i32
    %c0_i32_0 = arith.constant 0 : i32
    %c0_i32_1 = arith.constant 0 : i32
    return %c0_i32, %c0_i32_0 : i32, i32
  }
  func.func @transform_4(%arg0: i32) -> (i32, i32) {
    %c0_i32 = arith.constant 0 : i32
    %c0_i32_0 = arith.constant 0 : i32
    return %arg0, %c0_i32 : i32, i32
  }
  func.func @transform_5(%arg0: i32) -> (i32, i32) {
    %c0_i32 = arith.constant 0 : i32
    %c0_i32_0 = arith.constant 0 : i32
    return %arg0, %c0_i32 : i32, i32
  }
}

</mosaic_0001>

<llo_original>
// kernel: tpu_custom_call.1
$region0: #{tpu_custom_call.1}
  #allocation0 [shape = 'u32[]', space=smem, size = 0x4, offset = 0x4, fixed_abs, tag = 'smem constant byte address 0x4 - core index']
  #allocation1 [shape = 'u32[72,128]{1,0:T(1,128)}', space=vmem, size = 0x9000, scoped, tag = 'internal scratch']
  %s0 = inlined_call_operand.vmem [shape: f32[16,4], index: 0, kind: input, shape index: {}]
  %s1 = inlined_call_operand.vmem [shape: f32[4,128], index: 1, kind: input, shape index: {}]
  %s2 = inlined_call_operand.vmem [shape: f32[1,128], index: 2, kind: input, shape index: {}]
  %s3 = inlined_call_operand.vmem [shape: f32[128,8], index: 3, kind: input, shape index: {}]
  %s4 = inlined_call_operand.vmem [shape: f32[16,8], index: 4, kind: input, shape index: {}]
  %s5 = inlined_call_operand.vmem [shape: f32[16,8], index: 5, kind: output, shape index: {}]
  %s6 = sld [smem:[#allocation0]]
  $region53: #{tpu_custom_call.1} parent=0
    _
  %s8 = ssub.s32 1, %s6
  %s9 = scalar_select 0, %s8, %s6
  loop: start=0, step=1, limit=4
  $region2: #{tpu_custom_call.1} parent=0 // loop_pre_header
    _
  $region3: #{tpu_custom_call.1} parent=0 // loop_header
    %s11 = sphi 0, %s15
    %p12 = scmp.ge.s32.totalorder %s11, 4
    %s21 = sphi 0, %s23
    %s24 = sphi 0, %s21
    %s25 = sphi 0, %s24
    %s41 = sphi 0, %s25
    %s45 = sphi 0, %s45
    %s47 = sphi 0, %s45
    %s48 = sphi 0, %s47
    %s62 = sphi 0, %s48
    %s66 = sphi 0, %s66
    %s68 = sphi 0, %s66
    %s69 = sphi 0, %s68
    %s83 = sphi 0, %s69
    %s87 = sphi 0, %s87
    %s89 = sphi 0, %s87
    %s90 = sphi 0, %s89
    %s104 = sphi 0, %s90
    %s110 = sphi 0, %s112
    %s113 = sphi 0, %s110
    %s114 = sphi 0, %s113
    %s130 = sphi 0, %s114
    %s136 = sphi 0, %s138
    %s139 = sphi 0, %s136
    %s140 = sphi 0, %s139
    %s156 = sphi 0, %s140
  $region4: #{tpu_custom_call.1} parent=0 // loop_header_branch
    %14 = sbr.rel (%p12) target = $region8
  $region5: #{tpu_custom_call.1} parent=0 // loop_body
    %s16 = ssub.s32 %s11, 1
    %s17 = ssub.s32 %s11, 2
    %s18 = sadd.s32 %s11, 1
    %s19 = ssub.s32 %s11, %s18
    %p20 = scmp.eq.s32.totalorder %s19, 0
    %s22 = sadd.s32 %s21, 1
    %s23 = scalar_select %p20, %s21, %s22
    %p26 = pneg %p20
    %p27 = scmp.eq.s32.totalorder %s11, 1
    %p28 = por %p26, %p27
    %p29 = scmp.ne.s32.totalorder %s21, %s24
    %p30 = scmp.eq.s32.totalorder %s11, 0
    %p31 = por %p29, %p30
    %p32 = scmp.ne.s32.totalorder %s21, %s24
    %p33 = scmp.eq.s32.totalorder %s16, 1
    %p34 = por %p32, %p33
    %p35 = scmp.ne.s32.totalorder %s24, %s25
    %p36 = scmp.eq.s32.totalorder %s16, 0
    %p37 = por %p35, %p36
    %p38 = scmp.ne.s32.totalorder %s24, %s25
    %p39 = scmp.eq.s32.totalorder %s17, 1
    %p40 = por %p38, %p39
    %p42 = scmp.ne.s32.totalorder %s25, %s41
    %p43 = scmp.eq.s32.totalorder %s17, 0
    %p44 = por %p42, %p43
    %s46 = sadd.s32 %s45, 1
    %p49 = scmp.eq.s32.totalorder %s11, 1
    %p50 = scmp.ne.s32.totalorder %s45, %s47
    %p51 = scmp.eq.s32.totalorder %s11, 0
    %p52 = por %p50, %p51
    %p53 = scmp.ne.s32.totalorder %s45, %s47
    %p54 = scmp.eq.s32.totalorder %s16, 1
    %p55 = por %p53, %p54
    %p56 = scmp.ne.s32.totalorder %s47, %s48
    %p57 = scmp.eq.s32.totalorder %s16, 0
    %p58 = por %p56, %p57
    %p59 = scmp.ne.s32.totalorder %s47, %s48
    %p60 = scmp.eq.s32.totalorder %s17, 1
    %p61 = por %p59, %p60
    %p63 = scmp.ne.s32.totalorder %s48, %s62
    %p64 = scmp.eq.s32.totalorder %s17, 0
    %p65 = por %p63, %p64
    %s67 = sadd.s32 %s66, 1
    %p70 = scmp.eq.s32.totalorder %s11, 1
    %p71 = scmp.ne.s32.totalorder %s66, %s68
    %p72 = scmp.eq.s32.totalorder %s11, 0
    %p73 = por %p71, %p72
    %p74 = scmp.ne.s32.totalorder %s66, %s68
    %p75 = scmp.eq.s32.totalorder %s16, 1
    %p76 = por %p74, %p75
    %p77 = scmp.ne.s32.totalorder %s68, %s69
    %p78 = scmp.eq.s32.totalorder %s16, 0
    %p79 = por %p77, %p78
    %p80 = scmp.ne.s32.totalorder %s68, %s69
    %p81 = scmp.eq.s32.totalorder %s17, 1
    %p82 = por %p80, %p81
    %p84 = scmp.ne.s32.totalorder %s69, %s83
    %p85 = scmp.eq.s32.totalorder %s17, 0
    %p86 = por %p84, %p85
    %s88 = sadd.s32 %s87, 1
    %p91 = scmp.eq.s32.totalorder %s11, 1
    %p92 = scmp.ne.s32.totalorder %s87, %s89
    %p93 = scmp.eq.s32.totalorder %s11, 0
    %p94 = por %p92, %p93
    %p95 = scmp.ne.s32.totalorder %s87, %s89
    %p96 = scmp.eq.s32.totalorder %s16, 1
    %p97 = por %p95, %p96
    %p98 = scmp.ne.s32.totalorder %s89, %s90
    %p99 = scmp.eq.s32.totalorder %s16, 0
    %p100 = por %p98, %p99
    %p101 = scmp.ne.s32.totalorder %s89, %s90
    %p102 = scmp.eq.s32.totalorder %s17, 1
    %p103 = por %p101, %p102
    %p105 = scmp.ne.s32.totalorder %s90, %s104
    %p106 = scmp.eq.s32.totalorder %s17, 0
    %p107 = por %p105, %p106
    %s108 = ssub.s32 %s11, %s18
    %p109 = scmp.eq.s32.totalorder %s108, 0
    %s111 = sadd.s32 %s110, 1
    %s112 = scalar_select %p109, %s110, %s111
    %p115 = pneg %p109
    %p116 = scmp.eq.s32.totalorder %s11, 1
    %p117 = por %p115, %p116
    %p118 = scmp.ne.s32.totalorder %s110, %s113
    %p119 = scmp.eq.s32.totalorder %s11, 0
    %p120 = por %p118, %p119
    %p121 = scmp.ne.s32.totalorder %s110, %s113
    %p122 = scmp.eq.s32.totalorder %s16, 1
    %p123 = por %p121, %p122
    %p124 = scmp.ne.s32.totalorder %s113, %s114
    %p125 = scmp.eq.s32.totalorder %s16, 0
    %p126 = por %p124, %p125
    %p127 = scmp.ne.s32.totalorder %s113, %s114
    %p128 = scmp.eq.s32.totalorder %s17, 1
    %p129 = por %p127, %p128
    %p131 = scmp.ne.s32.totalorder %s114, %s130
    %p132 = scmp.eq.s32.totalorder %s17, 0
    %p133 = por %p131, %p132
    %s134 = ssub.s32 %s11, %s18
    %p135 = scmp.eq.s32.totalorder %s134, 0
    %s137 = sadd.s32 %s136, 1
    %s138 = scalar_select %p135, %s136, %s137
    %p141 = pneg %p135
    %p142 = scmp.eq.s32.totalorder %s11, 1
    %p143 = por %p141, %p142
    %p144 = scmp.ne.s32.totalorder %s136, %s139
    %p145 = scmp.eq.s32.totalorder %s11, 0
    %p146 = por %p144, %p145
    %p147 = scmp.ne.s32.totalorder %s136, %s139
    %p148 = scmp.eq.s32.totalorder %s16, 1
    %p149 = por %p147, %p148
    %p150 = scmp.ne.s32.totalorder %s139, %s140
    %p151 = scmp.eq.s32.totalorder %s16, 0
    %p152 = por %p150, %p151
    %p153 = scmp.ne.s32.totalorder %s139, %s140
    %p154 = scmp.eq.s32.totalorder %s17, 1
    %p155 = por %p153, %p154
    %p157 = scmp.ne.s32.totalorder %s140, %s156
    %p158 = scmp.eq.s32.totalorder %s17, 0
    %p159 = por %p157, %p158
    %p160 = scmp.le.s32.totalorder 1, %s11
    %p161 = scmp.lt.s32.totalorder %s11, 3
    %p162 = pnand %p160, %p161
    %p163 = pneg %p162
    // Predicated region
    $region9: #{tpu_custom_call.1} parent=5 // pred_check
      _
    $region10: #{tpu_custom_call.1} parent=5 // pred_check_branch
      %165 = sbr.rel (%p162) target = $region12
    $region11: #{tpu_custom_call.1} parent=5 // pred_region
      %s166 = ssub.s32 %s11, 1
      // Predicated region
      $region13: #{tpu_custom_call.1} parent=11 // pred_check
        %p167 = pneg %p58
      $region14: #{tpu_custom_call.1} parent=11 // pred_check_branch
        %169 = sbr.rel (%p167) target = $region16
      $region15: #{tpu_custom_call.1} parent=11 // pred_region
        _
      $region16: #{tpu_custom_call.1} parent=11 // pred_fallthru
        _
      // Predicated region
      $region17: #{tpu_custom_call.1} parent=11 // pred_check
        %p170 = pneg %p79
      $region18: #{tpu_custom_call.1} parent=11 // pred_check_branch
        %172 = sbr.rel (%p170) target = $region20
      $region19: #{tpu_custom_call.1} parent=11 // pred_region
        _
      $region20: #{tpu_custom_call.1} parent=11 // pred_fallthru
        _
      // Predicated region
      $region21: #{tpu_custom_call.1} parent=11 // pred_check
        %p173 = pneg %p100
      $region22: #{tpu_custom_call.1} parent=11 // pred_check_branch
        %175 = sbr.rel (%p173) target = $region24
      $region23: #{tpu_custom_call.1} parent=11 // pred_region
        _
      $region24: #{tpu_custom_call.1} parent=11 // pred_fallthru
        _
    $region12: #{tpu_custom_call.1} parent=5 // pred_fallthru
      _
    %p176 = scmp.lt.s32.totalorder %s11, 2
    // Predicated region
    $region25: #{tpu_custom_call.1} parent=5 // pred_check
      %p177 = pneg %p176
    $region26: #{tpu_custom_call.1} parent=5 // pred_check_branch
      %179 = sbr.rel (%p177) target = $region28
    $region27: #{tpu_custom_call.1} parent=5 // pred_region
      // Predicated region
      $region29: #{tpu_custom_call.1} parent=27 // pred_check
        %p180 = pneg %p31
      $region30: #{tpu_custom_call.1} parent=27 // pred_check_branch
        %182 = sbr.rel (%p180) target = $region32
      $region31: #{tpu_custom_call.1} parent=27 // pred_region
        %p183 = scmp.lt.s32.totalorder %s11, 1
        %s184 = scalar_select %p183, %s11, 1
        %s185 = smul.addr %s184, 8
        %s186 = scalar_lea.vmem %s0, %s185
      $region32: #{tpu_custom_call.1} parent=27 // pred_fallthru
        _
      // Predicated region
      $region33: #{tpu_custom_call.1} parent=27 // pred_check
        %p187 = pneg %p120
      $region34: #{tpu_custom_call.1} parent=27 // pred_check_branch
        %189 = sbr.rel (%p187) target = $region36
      $region35: #{tpu_custom_call.1} parent=27 // pred_region
        %p190 = scmp.lt.s32.totalorder %s11, 1
        %s191 = scalar_select %p190, %s11, 1
        %s192 = smul.addr %s191, 8
        %s193 = scalar_lea.vmem %s4, %s192
      $region36: #{tpu_custom_call.1} parent=27 // pred_fallthru
        _
    $region28: #{tpu_custom_call.1} parent=5 // pred_fallthru
      _
    %p194 = scmp.le.s32.totalorder 1, %s11
    %p195 = scmp.lt.s32.totalorder %s11, 3
    %p196 = pnand %p194, %p195
    %p197 = pneg %p196
    // Predicated region
    $region37: #{tpu_custom_call.1} parent=5 // pred_check
      _
    $region38: #{tpu_custom_call.1} parent=5 // pred_check_branch
      %199 = sbr.rel (%p196) target = $region40
    $region39: #{tpu_custom_call.1} parent=5 // pred_region
      %s200 = ssub.s32 %s11, 1
      %p201 = scmp.lt.s32.totalorder %s16, 1
      %s202 = scalar_select %p201, %s16, 1
      %s203 = smul.addr %s202, 8
      %s204 = scalar_lea.vmem %s0, %s203
      %p205 = pneg %p37
      %p206 = pneg %p34
      %p207 = pneg %p58
      %p208 = pneg %p55
      %p209 = pneg %p79
      %p210 = pneg %p76
      %p211 = pneg %p100
      %p212 = pneg %p97
      %p213 = scmp.lt.s32.totalorder %s16, 1
      %s214 = scalar_select %p213, %s16, 1
      %s215 = smul.addr %s214, 8
      %s216 = scalar_lea.vmem %s4, %s215
      %p217 = pneg %p126
      %p218 = pneg %p123
      %p219 = pneg %p152
      %p220 = pneg %p149
      %p221 = scmp.lt.s32.totalorder %s16, 1
      %s222 = scalar_select %p221, %s16, 1
      %s223 = smul.addr %s222, 8
      %s224 = scalar_lea.vmem %s5, %s223
      %p225 = scmp.lt.s32.totalorder %s16, 1
      %s226 = scalar_select %p225, %s16, 1
      %s227 = smul.addr %s226, 8
      %s228 = scalar_lea.vmem %s0, %s227
      %p229 = scmp.lt.s32.totalorder %s16, 1
      %s230 = scalar_select %p229, %s16, 1
      %s231 = smul.addr %s230, 8
      %s232 = scalar_lea.vmem %s4, %s231
      %p233 = scmp.lt.s32.totalorder %s16, 1
      %s234 = scalar_select %p233, %s16, 1
      %s235 = smul.addr %s234, 8
      %s236 = scalar_lea.vmem %s5, %s235
      %v237 = vld [vmem:[%s228] sm:$0xff]
      %v238 = vld [vmem:[%s1] sm:$0xf]
      %v239 = vld [vmem:[%s2] sm:$0x1]
      %v241 = vperm.slane %v239, 0
      %vm243 = vcmask 31744
      %v245 = vsel %vm243, %v237, 0
      %vm247 = vcmask 1043456
      %v249 = vsel %vm247, %v238, 0
      %251 = vmatpush.msra.mxu0 0.0
      %252 = vmatpush.msra.mxu0 0.0
      %253 = vmatpush.msra.mxu0 0.0
      %254 = vmatpush.msra.mxu0 0.0
      %255 = vmatpush.msra.mxu0 0.0
      %256 = vmatpush.msra.mxu0 0.0
      %257 = vmatpush.msra.mxu0 0.0
      %258 = vmatpush.msra.mxu0 0.0
      %259 = vmatpush.msra.mxu0 0.0
      %260 = vmatpush.msra.mxu0 0.0
      %261 = vmatpush.msra.mxu0 0.0
      %262 = vmatpush.msra.mxu0 0.0
      %263 = vmatpush.msra.mxu0 0.0
      %264 = vmatpush.msra.mxu0 0.0
      %265 = vmatpush.msra.mxu0 0.0
      %266 = vmatpush.msra.mxu0 %v249
      %267 = vmatmul.f32.gmra.mxu0 %v245
      %v268 = vpop.f32.mrf.mxu0
      %v269 = vadd.f32 %v241, %v268
      %270 = vdwg.mxu0
      %v271 = vlaneseq
      %v272 = vand.u32 %v271, 127
      %273 = vmin.xlane.f32.xlu0 %v269
      %v274 = vpop.xlane.xlu0 %273
      %vm275 = vcmp.eq.f32.partialorder %v269, %v274
      %v276 = vsel %vm275, %v272, 128
      %v277 = vand.u32 %v276, 65535
      %v278 = vshra.s32 %v276, 16
      %v279 = vcvt.s32.f32 %v277
      %v280 = vcvt.s32.f32 %v278
      %281 = vmin.xlane.f32.xlu0 %v280
      %v282 = vpop.xlane.xlu0 %281
      %vm283 = vcmp.eq.f32.partialorder %v280, %v282
      %v284 = vsel %vm283, %v279, inf
      %285 = vmin.xlane.f32.xlu0 %v284
      %v286 = vpop.xlane.xlu0 %285
      %v287 = vcvt.f32.s32 %v286
      %v288 = vcvt.f32.s32 %v282
      %v289 = vshll.u32 %v288, 16
      %v290 = vadd.s32 %v289, %v287
      %vm291 = vcmp.eq.s32.totalorder %v272, %v290
      %v292 = vsel %vm291, 1, 0
      %v293 = vcvt.s32.f32 %v292
      %v294 = vld [vmem:[%s3] sm:$0xff]
      %v295 = vld [vmem:[%s3 + $0x8] sm:$0xff]
      %v296 = vld [vmem:[%s3 + $0x10] sm:$0xff]
      %v297 = vld [vmem:[%s3 + $0x18] sm:$0xff]
      %v298 = vld [vmem:[%s3 + $0x20] sm:$0xff]
      %v299 = vld [vmem:[%s3 + $0x28] sm:$0xff]
      %v300 = vld [vmem:[%s3 + $0x30] sm:$0xff]
      %v301 = vld [vmem:[%s3 + $0x38] sm:$0xff]
      %v302 = vld [vmem:[%s3 + $0x40] sm:$0xff]
      %v303 = vld [vmem:[%s3 + $0x48] sm:$0xff]
      %v304 = vld [vmem:[%s3 + $0x50] sm:$0xff]
      %v305 = vld [vmem:[%s3 + $0x58] sm:$0xff]
      %v306 = vld [vmem:[%s3 + $0x60] sm:$0xff]
      %v307 = vld [vmem:[%s3 + $0x68] sm:$0xff]
      %v308 = vld [vmem:[%s3 + $0x70] sm:$0xff]
      %v309 = vld [vmem:[%s3 + $0x78] sm:$0xff]
      %310 = vmatpush.msra.mxu0 %v309
      %311 = vmatpush.msra.mxu0 %v308
      %312 = vmatpush.msra.mxu0 %v307
      %313 = vmatpush.msra.mxu0 %v306
      %314 = vmatpush.msra.mxu0 %v305
      %315 = vmatpush.msra.mxu0 %v304
      %316 = vmatpush.msra.mxu0 %v303
      %317 = vmatpush.msra.mxu0 %v302
      %318 = vmatpush.msra.mxu0 %v301
      %319 = vmatpush.msra.mxu0 %v300
      %320 = vmatpush.msra.mxu0 %v299
      %321 = vmatpush.msra.mxu0 %v298
      %322 = vmatpush.msra.mxu0 %v297
      %323 = vmatpush.msra.mxu0 %v296
      %324 = vmatpush.msra.mxu0 %v295
      %325 = vmatpush.msra.mxu0 %v294
      %326 = vmatmul.f32.gmra.mxu0 %v293
      %v327 = vpop.f32.mrf.mxu0
      %v328 = vadd.f32 0.0, %v327
      %329 = vdwg.mxu0
      %v330 = vld [vmem:[%s232] sm:$0xff]
      %v331 = vsub.f32 %v330, %v328
      %vm332 = vcmask 64512
      %333 = vst.msk [vmem:[%s236] sm:$0xff] %vm332, %v331
      %p334 = scmp.lt.s32.totalorder %s16, 1
      %s335 = scalar_select %p334, %s16, 1
      %s336 = smul.addr %s335, 8
      %s337 = scalar_lea.vmem %s5, %s336
      // Predicated region
      $region41: #{tpu_custom_call.1} parent=39 // pred_check
        %p338 = pneg %p149
      $region42: #{tpu_custom_call.1} parent=39 // pred_check_branch
        %340 = sbr.rel (%p338) target = $region44
      $region43: #{tpu_custom_call.1} parent=39 // pred_region
        _
      $region44: #{tpu_custom_call.1} parent=39 // pred_fallthru
        _
    $region40: #{tpu_custom_call.1} parent=5 // pred_fallthru
      _
    %p341 = scmp.le.s32.totalorder 2, %s11
    // Predicated region
    $region45: #{tpu_custom_call.1} parent=5 // pred_check
      %p342 = pneg %p341
    $region46: #{tpu_custom_call.1} parent=5 // pred_check_branch
      %344 = sbr.rel (%p342) target = $region48
    $region47: #{tpu_custom_call.1} parent=5 // pred_region
      %s345 = ssub.s32 %s11, 2
      // Predicated region
      $region49: #{tpu_custom_call.1} parent=47 // pred_check
        %p346 = pneg %p155
      $region50: #{tpu_custom_call.1} parent=47 // pred_check_branch
        %348 = sbr.rel (%p346) target = $region52
      $region51: #{tpu_custom_call.1} parent=47 // pred_region
        %p349 = scmp.lt.s32.totalorder %s17, 1
        %s350 = scalar_select %p349, %s17, 1
        %s351 = smul.addr %s350, 8
        %s352 = scalar_lea.vmem %s5, %s351
      $region52: #{tpu_custom_call.1} parent=47 // pred_fallthru
        _
    $region48: #{tpu_custom_call.1} parent=5 // pred_fallthru
      _
  $region6: #{tpu_custom_call.1} parent=0 // loop_footer
    %s15 = sadd.s32 1, %s11
  $region7: #{tpu_custom_call.1} parent=0 // loop_footer_branch
    %10 = sbr.rel target = $region3
  $region8: #{tpu_custom_call.1} parent=0 // loop_exit
    _

</llo_original>
